<compile_context>
chip_gen: v7x
topology: tpu7x:2x2x1
jax: 0.10.0
libtpu: 0.0.40
codegen_flags: <defaults>
</compile_context>

<pallas_src>
import math
import functools

import jax
import jax.numpy as jnp
from jax.experimental import pallas as pl
from jax.experimental.pallas import tpu as pltpu

NEG_SLOPE = 0.2
NEG_INF = -1e30  # finite "-inf": exp underflows to exactly 0, no NaNs in f32


# ----------------------------------------------------------------------------- projection
def project_kernel(x_ref, w_ref, abd_ref, feat_ref, el_ref, er_ref, *,
                   num_heads, dot_dtype):
    """feat = x @ W (one lane-dense MXU dot); el/er = feat @ block-diag(attn_l|attn_r)."""
    x = x_ref[...].astype(dot_dtype)                          # (tr, Din)
    w = w_ref[...].astype(dot_dtype)                          # (Din, H*D)
    feat_all = jnp.dot(x, w, preferred_element_type=jnp.float32)   # (tr, H*D) f32 acc
    feat_ref[...] = feat_all.astype(feat_ref.dtype)
    # One narrow dot (2H output columns) replaces 2H elementwise-muls + cross-lane reduces.
    eler = jnp.dot(feat_all, abd_ref[...],
                   preferred_element_type=jnp.float32)        # (tr, 2H): [el | er]
    el_ref[...] = eler[:, :num_heads]
    er_ref[...] = eler[:, num_heads:]


# ----------------------------------------------------------------------------- attention
def attention_kernel(er_ref, el_ref, feat_ref, adj_ref, out_ref,
                     m_scr, d_scr, acc_scr, *, num_heads, out_feats, dot_dtype):
    j = pl.program_id(1)
    h, d = num_heads, out_feats
    hd = h * d
    td = er_ref.shape[1]
    ts = el_ref.shape[2]

    @pl.when(j == 0)
    def _init():
        # Running max starts at 0 (not -inf): softmax is shift-invariant, logits are O(1)
        # for well-scaled inputs, and masked logits (= NEG_INF) underflow exp() to exactly
        # 0 — so dst rows whose neighbours all live in other src tiles stay clean.
        # TODO(synk): rows whose every *unmasked* logit is below ~-88 underflow to 0 output.
        m_scr[...] = jnp.zeros_like(m_scr)
        d_scr[...] = jnp.zeros_like(d_scr)
        acc_scr[...] = jnp.zeros_like(acc_scr)

    # int8 adjacency -> additive mask, expanded once per (dst, src) tile, head-invariant.
    bias = (1.0 - adj_ref[...].astype(jnp.float32)) * NEG_INF           # (td, ts) f32

    p_blocks = []
    alpha_blocks = []
    for hh in range(h):
        er_h = er_ref[hh]                                    # (td, 1)  dst-indexed
        el_h = el_ref[hh]                                    # (1, ts)  src-indexed
        e = er_h + el_h                                      # (td, ts)
        e = jnp.maximum(e, NEG_SLOPE * e)                    # LeakyReLU(0.2): mul + max
        logits = e + bias                                    # masked entries -> ~NEG_INF

        m_prev = m_scr[hh]                                   # (td, 1)
        m_new = jnp.maximum(m_prev, jnp.max(logits, axis=-1, keepdims=True))
        alpha = jnp.exp(m_prev - m_new)                      # rescale factor for old state
        p = jnp.exp(logits - m_new)                          # (td, ts); masked cols == 0

        d_scr[hh] = alpha * d_scr[hh] + jnp.sum(p, axis=-1, keepdims=True)
        m_scr[hh] = m_new
        p_blocks.append(p)
        alpha_blocks.append(jnp.broadcast_to(alpha, (td, d)))

    # Head-fused aggregation on the MXU: one K = H*ts, N = H*D (=128 lanes) dot against a
    # block-diagonal feat built in-register from the lane-dense (ts, H*D) src tile.
    p_all = jnp.concatenate(p_blocks, axis=-1).astype(dot_dtype)        # (td, H*ts)
    alpha_all = jnp.concatenate(alpha_blocks, axis=-1)                  # (td, H*D)

    feat_tile = feat_ref[...].astype(jnp.float32)                       # (ts, H*D)
    lane_head = jax.lax.broadcasted_iota(jnp.int32, (h, 1, hd), 2) // d
    head_idx = jax.lax.broadcasted_iota(jnp.int32, (h, 1, hd), 0)
    feat_bd = jnp.where(lane_head == head_idx,
                        jnp.broadcast_to(feat_tile[None], (h, ts, hd)),
                        0.0).reshape(h * ts, hd).astype(dot_dtype)      # (H*ts, H*D)

    acc_scr[...] = alpha_all * acc_scr[...] + jnp.dot(
        p_all, feat_bd, preferred_element_type=jnp.float32)             # (td, H*D) f32

    @pl.when(j == pl.num_programs(1) - 1)
    def _finalize():
        inv_heads = 1.0 / h
        scale_blocks = []
        for hh in range(h):
            # Post-normalisation: one lane-dense (td, H*D) multiply; 1/H head-mean factor
            # folded into the same scale; approx reciprocal runs on the (idle) EUP slot.
            # Zero in-degree rows (denom == 0) output 0 instead of NaN.
            inv = pl.reciprocal(jnp.maximum(d_scr[hh], 1e-30), approx=True) * inv_heads
            scale_blocks.append(jnp.broadcast_to(inv, (td, d)))
        scale = jnp.concatenate(scale_blocks, axis=-1)                  # (td, H*D)
        out_ref[...] = (acc_scr[...] * scale).astype(out_ref.dtype)


# ----------------------------------------------------------------------------- wrapper
def gat_conv(x, w, attn_l, attn_r, adj, *, num_heads, out_feats,
             dst_tile=256, src_tile=256, row_tile=256, dot_dtype=jnp.bfloat16):
    """x: (N, Din) f32; w: (Din, H*D) f32; attn_l/r: (H, D) f32; adj: (N, N), adj[v,u]=1 iff u->v."""
    n, din = x.shape
    h, d = num_heads, out_feats
    dst_tile, src_tile, row_tile = min(dst_tile, n), min(src_tile, n), min(row_tile, n)
    assert n % dst_tile == 0 and n % src_tile == 0 and n % row_tile == 0
    assert w.shape == (din, h * d)

    # --- tiny host-side (XLA) layout prep ---
    eye = jnp.eye(h, dtype=jnp.float32)
    al_bd = (attn_l[:, :, None] * eye[:, None, :]).reshape(h * d, h)  # block-diag (H*D, H)
    ar_bd = (attn_r[:, :, None] * eye[:, None, :]).reshape(h * d, h)
    a_bd = jnp.concatenate([al_bd, ar_bd], axis=-1)                   # (H*D, 2H)
    adj_i8 = (adj > 0).astype(jnp.int8)                               # 1/4 the HBM bytes of f32

    feat_dtype = dot_dtype
    itemsize = jnp.dtype(feat_dtype).itemsize

    # --- kernel 1: fc projection + attention logits (MXU), tiled over rows ---
    proj = pl.pallas_call(
        functools.partial(project_kernel, num_heads=h, dot_dtype=dot_dtype),
        grid_spec=pltpu.PrefetchScalarGridSpec(
            num_scalar_prefetch=0,
            grid=(n // row_tile,),
            in_specs=[
                pl.BlockSpec((row_tile, din), lambda i: (i, 0)),
                pl.BlockSpec((din, h * d), lambda i: (0, 0)),
                pl.BlockSpec((h * d, 2 * h), lambda i: (0, 0)),
            ],
            out_specs=[
                pl.BlockSpec((row_tile, h * d), lambda i: (i, 0)),
                pl.BlockSpec((row_tile, h), lambda i: (i, 0)),
                pl.BlockSpec((row_tile, h), lambda i: (i, 0)),
            ],
        ),
        out_shape=(
            jax.ShapeDtypeStruct((n, h * d), feat_dtype),   # feat, lane-dense, MXU dtype
            jax.ShapeDtypeStruct((n, h), jnp.float32),      # el (src side)
            jax.ShapeDtypeStruct((n, h), jnp.float32),      # er (dst side)
        ),
        compiler_params=pltpu.CompilerParams(
            dimension_semantics=("parallel",),
            vmem_limit_bytes=32 * 1024 * 1024,
        ),
        cost_estimate=pl.CostEstimate(
            flops=2 * n * din * h * d + 2 * n * (h * d) * (2 * h),
            transcendentals=0,
            bytes_accessed=(n * din * 4 + din * h * d * 4 + h * d * 2 * h * 4
                            + n * h * d * itemsize + 2 * n * h * 4),
        ),
    )
    feat, el, er = proj(x, w, a_bd)

    # Tiny layout tweaks so the attention kernel only does leading-axis (head) indexing.
    el_r = el.T.reshape(h, 1, n)     # (H, 1, N): per-head row vector (src)
    er_r = er.T.reshape(h, n, 1)     # (H, N, 1): per-head column vector (dst)

    # --- kernel 2: tiled online-softmax attention + head-fused aggregation ---
    n_dst_tiles = n // dst_tile
    grid = (n_dst_tiles, n // src_tile)
    attn = pl.pallas_call(
        functools.partial(attention_kernel, num_heads=h, out_feats=d, dot_dtype=dot_dtype),
        grid_spec=pltpu.PrefetchScalarGridSpec(
            num_scalar_prefetch=0,
            grid=grid,
            in_specs=[
                pl.BlockSpec((h, dst_tile, 1), lambda i, j: (0, i, 0)),   # er (dst)
                pl.BlockSpec((h, 1, src_tile), lambda i, j: (0, 0, j)),   # el (src)
                pl.BlockSpec((src_tile, h * d), lambda i, j: (j, 0)),     # feat (src)
                pl.BlockSpec((dst_tile, src_tile), lambda i, j: (i, j)),  # adjacency int8
            ],
            out_specs=pl.BlockSpec((dst_tile, h * d), lambda i, j: (i, 0)),
            scratch_shapes=[
                pltpu.VMEM((h, dst_tile, 1), jnp.float32),     # running max
                pltpu.VMEM((h, dst_tile, 1), jnp.float32),     # running denom
                pltpu.VMEM((dst_tile, h * d), jnp.float32),    # lane-dense accumulator
            ],
        ),
        out_shape=jax.ShapeDtypeStruct((n, h * d), jnp.float32),
        compiler_params=pltpu.CompilerParams(
            dimension_semantics=("parallel", "arbitrary"),
            vmem_limit_bytes=48 * 1024 * 1024,   # fits tiles up to 512; < v7x's 64 MiB
        ),
        cost_estimate=pl.CostEstimate(
            flops=2 * n * n * h * h * d + 8 * h * n * n,
            transcendentals=h * n * n,
            bytes_accessed=(n * n * 1                              # int8 adjacency
                            + n_dst_tiles * n * h * d * itemsize   # feat re-reads per dst tile
                            + n_dst_tiles * n * h * 4              # el re-reads per dst tile
                            + n * h * 4                            # er
                            + n * h * d * 4),                      # output
        ),
    )
    rst = attn(er_r, el_r, feat, adj_i8)        # (N, H*D); 1/H already folded in

    # Head mean: the 1/H factor was folded into the in-kernel normalisation -> plain sum.
    return rst.reshape(n, h, d).sum(axis=1)


# ----------------------------------------------------------------------------- reference
def reference_gat(x, w, attn_l, attn_r, adj, num_heads, out_feats):
    """Pure-JAX reference mirroring the PyTorch forward."""
    n = x.shape[0]
    feat = (x @ w).reshape(n, num_heads, out_feats)                       # (N, H, D)
    el = jnp.sum(feat * attn_l[None], axis=-1)                            # (N, H)
    er = jnp.sum(feat * attn_r[None], axis=-1)                            # (N, H)
    e = er[:, None, :] + el[None, :, :]                                   # (Ndst, Nsrc, H)
    e = jnp.where(e > 0, e, NEG_SLOPE * e)
    logits = jnp.where(adj[:, :, None] > 0, e, NEG_INF)
    m = jnp.max(logits, axis=1, keepdims=True)
    p = jnp.exp(logits - m) * (adj[:, :, None] > 0)
    a = p / jnp.sum(p, axis=1, keepdims=True)                             # (Ndst, Nsrc, H)
    rst = jnp.einsum("vuh,uhd->vhd", a, feat)                             # (N, H, D)
    return jnp.mean(rst, axis=1)                                          # (N, D)


def xavier_normal(key, shape, fan_in, fan_out, gain):
    std = gain * math.sqrt(2.0 / (fan_in + fan_out))
    return std * jax.random.normal(key, shape, dtype=jnp.float32)


if __name__ == "__main__":
    # Small but tile-exercising shapes: 256-tiles give a (2, 2) dst x src grid
    # (even "parallel" dst axis -> clean 2-TensorCore split on v7x).
    N = 512         # number of nodes
    DIN = 64        # input feature size
    DOUT = 32       # out_feats
    H = 4           # num_heads  (H * DOUT = 128 -> lane-dense kernel output)

    key = jax.random.PRNGKey(0)
    kx, kw, kal, kar, kadj = jax.random.split(key, 5)
    gain = math.sqrt(2.0)  # nn.init.calculate_gain('relu')

    x = jax.random.normal(kx, (N, DIN), dtype=jnp.float32)
    # torch Linear weight is (H*D, Din); we store its transpose (Din, H*D).
    w = xavier_normal(kw, (DIN, H * DOUT), fan_in=DIN, fan_out=H * DOUT, gain=gain)
    attn_l = xavier_normal(kal, (H, DOUT), fan_in=H * DOUT, fan_out=DOUT, gain=gain)
    attn_r = xavier_normal(kar, (H, DOUT), fan_in=H * DOUT, fan_out=DOUT, gain=gain)

    # Random sparse-ish adjacency (adj[v, u] = edge u -> v), plus self-loops so every
    # node has in-degree >= 1 (the module would raise otherwise).
    adj = (jax.random.uniform(kadj, (N, N)) < 0.1).astype(jnp.float32)
    adj = jnp.maximum(adj, jnp.eye(N, dtype=jnp.float32))

    ref = reference_gat(x, w, attn_l, attn_r, adj, H, DOUT)

    # Fast path: bf16-fed MXU (native on v5e/v6e/v7x), f32 accumulation + f32 softmax math.
    out_bf16 = gat_conv(x, w, attn_l, attn_r, adj, num_heads=H, out_feats=DOUT,
                        dst_tile=256, src_tile=256, row_tile=256,
                        dot_dtype=jnp.bfloat16)
    out_bf16 = jax.block_until_ready(out_bf16)
    assert out_bf16.shape == (N, DOUT)
    assert jnp.allclose(out_bf16, ref, atol=5e-2, rtol=5e-2), (
        "bf16 mismatch, max abs err %g" % float(jnp.max(jnp.abs(out_bf16 - ref))))

    # Tight correctness cross-check: f32-fed MXU path, smaller tiles so the online softmax
    # accumulates across 4 src tiles and the parallel dst axis has 4 entries.
    out_f32 = gat_conv(x, w, attn_l, attn_r, adj, num_heads=H, out_feats=DOUT,
                       dst_tile=128, src_tile=128, row_tile=128,
                       dot_dtype=jnp.float32)
    out_f32 = jax.block_until_ready(out_f32)
    assert jnp.allclose(out_f32, ref, atol=5e-3, rtol=5e-3), (
        "f32 mismatch, max abs err %g" % float(jnp.max(jnp.abs(out_f32 - ref))))

    print("KERNEL_OK")
</pallas_src>

<mosaic_0001>
module attributes {stable_mosaic.version = 11 : i64} {
  func.func @project_kernel(%arg0: i32, %arg1: memref<256x64xf32, #tpu.memory_space<vmem>>, %arg2: memref<64x128xf32, #tpu.memory_space<vmem>>, %arg3: memref<128x8xf32, #tpu.memory_space<vmem>>, %arg4: memref<256x128xbf16, #tpu.memory_space<vmem>>, %arg5: memref<256x4xf32, #tpu.memory_space<vmem>>, %arg6: memref<256x4xf32, #tpu.memory_space<vmem>>) attributes {dimension_semantics = [#tpu.dimension_semantics<parallel>], iteration_bounds = array<i64: 2>, scalar_prefetch = 0 : i64, scratch_operands = 0 : i64, tpu.core_type = #tpu.core_type<tc>, window_params = [{transform_indices = @transform_0, window_bounds = array<i64: 256, 64>}, {pipeline_mode = #tpu.pipeline_mode<synchronous>, transform_indices = @transform_1, window_bounds = array<i64: 64, 128>}, {pipeline_mode = #tpu.pipeline_mode<synchronous>, transform_indices = @transform_2, window_bounds = array<i64: 128, 8>}, {transform_indices = @transform_3, window_bounds = array<i64: 256, 128>}, {transform_indices = @transform_4, window_bounds = array<i64: 256, 4>}, {transform_indices = @transform_5, window_bounds = array<i64: 256, 4>}]} {
    %c0 = arith.constant 0 : index
    %c0_0 = arith.constant 0 : index
    %0 = vector.load %arg1[%c0, %c0_0] : memref<256x64xf32, #tpu.memory_space<vmem>>, vector<256x64xf32>
    %1 = arith.truncf %0 : vector<256x64xf32> to vector<256x64xbf16>
    %c0_1 = arith.constant 0 : index
    %c0_2 = arith.constant 0 : index
    %2 = vector.load %arg2[%c0_1, %c0_2] : memref<64x128xf32, #tpu.memory_space<vmem>>, vector<64x128xf32>
    %3 = arith.truncf %2 : vector<64x128xf32> to vector<64x128xbf16>
    %cst = arith.constant dense<0.000000e+00> : vector<256x128xf32>
    %4 = tpu.matmul %1, %3, %cst {dimension_numbers = #tpu.dot_dimension_numbers<[1], [0], [0], [1], [0, 0, 1, 1], [], []>} : vector<256x64xbf16>, vector<64x128xbf16>, vector<256x128xf32> -> vector<256x128xf32>
    %5 = arith.truncf %4 : vector<256x128xf32> to vector<256x128xbf16>
    %c0_3 = arith.constant 0 : index
    %c0_4 = arith.constant 0 : index
    %6 = vector.load %arg4[%c0_3, %c0_4] : memref<256x128xbf16, #tpu.memory_space<vmem>>, vector<256x128xbf16>
    tpu.vector_store %arg4[%c0_3, %c0_4], %5 {strides = array<i32>} : memref<256x128xbf16, #tpu.memory_space<vmem>>, vector<256x128xbf16>,
    %c0_5 = arith.constant 0 : index
    %c0_6 = arith.constant 0 : index
    %7 = vector.load %arg3[%c0_5, %c0_6] : memref<128x8xf32, #tpu.memory_space<vmem>>, vector<128x8xf32>
    %cst_7 = arith.constant dense<0.000000e+00> : vector<256x8xf32>
    %8 = tpu.matmul %4, %7, %cst_7 {dimension_numbers = #tpu.dot_dimension_numbers<[1], [0], [0], [1], [0, 0, 1, 1], [], []>} : vector<256x128xf32>, vector<128x8xf32>, vector<256x8xf32> -> vector<256x8xf32>
    %9 = vector.extract_strided_slice %8 {offsets = [0, 0], sizes = [256, 4], strides = [1, 1]} : vector<256x8xf32> to vector<256x4xf32>
    %c0_8 = arith.constant 0 : index
    %c0_9 = arith.constant 0 : index
    %10 = vector.load %arg5[%c0_8, %c0_9] : memref<256x4xf32, #tpu.memory_space<vmem>>, vector<256x4xf32>
    tpu.vector_store %arg5[%c0_8, %c0_9], %9 {strides = array<i32>} : memref<256x4xf32, #tpu.memory_space<vmem>>, vector<256x4xf32>,
    %11 = vector.extract_strided_slice %8 {offsets = [0, 4], sizes = [256, 4], strides = [1, 1]} : vector<256x8xf32> to vector<256x4xf32>
    %c0_10 = arith.constant 0 : index
    %c0_11 = arith.constant 0 : index
    %12 = vector.load %arg6[%c0_10, %c0_11] : memref<256x4xf32, #tpu.memory_space<vmem>>, vector<256x4xf32>
    tpu.vector_store %arg6[%c0_10, %c0_11], %11 {strides = array<i32>} : memref<256x4xf32, #tpu.memory_space<vmem>>, vector<256x4xf32>,
    return
  }
  func.func @transform_0(%arg0: i32) -> (i32, i32) {
    %c0_i32 = arith.constant 0 : i32
    %c0_i32_0 = arith.constant 0 : i32
    return %arg0, %c0_i32 : i32, i32
  }
  func.func @transform_1(%arg0: i32) -> (i32, i32) {
    %c0_i32 = arith.constant 0 : i32
    %c0_i32_0 = arith.constant 0 : i32
    %c0_i32_1 = arith.constant 0 : i32
    return %c0_i32, %c0_i32_0 : i32, i32
  }
  func.func @transform_2(%arg0: i32) -> (i32, i32) {
    %c0_i32 = arith.constant 0 : i32
    %c0_i32_0 = arith.constant 0 : i32
    %c0_i32_1 = arith.constant 0 : i32
    return %c0_i32, %c0_i32_0 : i32, i32
  }
  func.func @transform_3(%arg0: i32) -> (i32, i32) {
    %c0_i32 = arith.constant 0 : i32
    %c0_i32_0 = arith.constant 0 : i32
    return %arg0, %c0_i32 : i32, i32
  }
  func.func @transform_4(%arg0: i32) -> (i32, i32) {
    %c0_i32 = arith.constant 0 : i32
    %c0_i32_0 = arith.constant 0 : i32
    return %arg0, %c0_i32 : i32, i32
  }
  func.func @transform_5(%arg0: i32) -> (i32, i32) {
    %c0_i32 = arith.constant 0 : i32
    %c0_i32_0 = arith.constant 0 : i32
    return %arg0, %c0_i32 : i32, i32
  }
}

</mosaic_0001>

<llo_original>
// kernel: tpu_custom_call.1
$region0: #{tpu_custom_call.1}
  #allocation0 [shape = 'u32[]', space=smem, size = 0x4, offset = 0x4, fixed_abs, tag = 'smem constant byte address 0x4 - core index']
  #allocation1 [shape = 'u32[144,128]{1,0:T(1,128)}', space=vmem, size = 0x12000, scoped, tag = 'internal scratch']
  %s0 = inlined_call_operand.vmem [shape: f32[512,64], index: 0, kind: input, shape index: {}]
  %s1 = inlined_call_operand.vmem [shape: f32[64,128], index: 1, kind: input, shape index: {}]
  %s2 = inlined_call_operand.vmem [shape: f32[128,8], index: 2, kind: input, shape index: {}]
  %s3 = inlined_call_operand.hbm [shape: bf16[512,128], index: 3, kind: output, shape index: {0}]
  %s4 = inlined_call_operand.vmem [shape: f32[512,4], index: 4, kind: output, shape index: {1}]
  %s5 = inlined_call_operand.vmem [shape: f32[512,4], index: 5, kind: output, shape index: {2}]
  %6 = xla_tuple %s3, %s4, %s5
  %s7 = sld [smem:[#allocation0]]
  $region61: #{tpu_custom_call.1} parent=0
    _
  %s9 = ssub.s32 1, %s7
  %s10 = scalar_select 0, %s9, %s7
  $region1: #{tpu_custom_call.1} parent=0
    #allocation2 [shape = 'u8[131072]{0}', space=vmem, size = 0x20000, scoped, tag = 'output window, operand 0']
    #allocation3 [shape = 's32[2]{0}', space=sflag, size = 0x8, scoped, tag = 'scoped memory for tpu_custom_call.1']
    %11 = vsyncpa [#allocation3], 0
    %s12 = scalar_lea.sflag [#allocation3], 1
    %13 = vsyncpa %s12, 0
    loop: start=0, step=1, limit=4
    $region2: #{tpu_custom_call.1} parent=1 // loop_pre_header
      _
    $region3: #{tpu_custom_call.1} parent=1 // loop_header
      %s15 = sphi 0, %s19
      %p16 = scmp.ge.s32.totalorder %s15, 4
      %s25 = sphi 0, %s27
      %s28 = sphi 0, %s25
      %s29 = sphi 0, %s28
      %s45 = sphi 0, %s29
      %s49 = sphi 0, %s49
      %s51 = sphi 0, %s49
      %s52 = sphi 0, %s51
      %s66 = sphi 0, %s52
      %s70 = sphi 0, %s70
      %s72 = sphi 0, %s70
      %s73 = sphi 0, %s72
      %s87 = sphi 0, %s73
      %s93 = sphi 0, %s95
      %s96 = sphi 0, %s93
      %s97 = sphi 0, %s96
      %s113 = sphi 0, %s97
      %s119 = sphi 0, %s121
      %s122 = sphi 0, %s119
      %s123 = sphi 0, %s122
      %s139 = sphi 0, %s123
      %s145 = sphi 0, %s147
      %s148 = sphi 0, %s145
      %s149 = sphi 0, %s148
      %s165 = sphi 0, %s149
    $region4: #{tpu_custom_call.1} parent=1 // loop_header_branch
      %18 = sbr.rel (%p16) target = $region8
    $region5: #{tpu_custom_call.1} parent=1 // loop_body
      %s20 = ssub.s32 %s15, 1
      %s21 = ssub.s32 %s15, 2
      %s22 = sadd.s32 %s15, 1
      %s23 = ssub.s32 %s15, %s22
      %p24 = scmp.eq.s32.totalorder %s23, 0
      %s26 = sadd.s32 %s25, 1
      %s27 = scalar_select %p24, %s25, %s26
      %p30 = pneg %p24
      %p31 = scmp.eq.s32.totalorder %s15, 1
      %p32 = por %p30, %p31
      %p33 = scmp.ne.s32.totalorder %s25, %s28
      %p34 = scmp.eq.s32.totalorder %s15, 0
      %p35 = por %p33, %p34
      %p36 = scmp.ne.s32.totalorder %s25, %s28
      %p37 = scmp.eq.s32.totalorder %s20, 1
      %p38 = por %p36, %p37
      %p39 = scmp.ne.s32.totalorder %s28, %s29
      %p40 = scmp.eq.s32.totalorder %s20, 0
      %p41 = por %p39, %p40
      %p42 = scmp.ne.s32.totalorder %s28, %s29
      %p43 = scmp.eq.s32.totalorder %s21, 1
      %p44 = por %p42, %p43
      %p46 = scmp.ne.s32.totalorder %s29, %s45
      %p47 = scmp.eq.s32.totalorder %s21, 0
      %p48 = por %p46, %p47
      %s50 = sadd.s32 %s49, 1
      %p53 = scmp.eq.s32.totalorder %s15, 1
      %p54 = scmp.ne.s32.totalorder %s49, %s51
      %p55 = scmp.eq.s32.totalorder %s15, 0
      %p56 = por %p54, %p55
      %p57 = scmp.ne.s32.totalorder %s49, %s51
      %p58 = scmp.eq.s32.totalorder %s20, 1
      %p59 = por %p57, %p58
      %p60 = scmp.ne.s32.totalorder %s51, %s52
      %p61 = scmp.eq.s32.totalorder %s20, 0
      %p62 = por %p60, %p61
      %p63 = scmp.ne.s32.totalorder %s51, %s52
      %p64 = scmp.eq.s32.totalorder %s21, 1
      %p65 = por %p63, %p64
      %p67 = scmp.ne.s32.totalorder %s52, %s66
      %p68 = scmp.eq.s32.totalorder %s21, 0
      %p69 = por %p67, %p68
      %s71 = sadd.s32 %s70, 1
      %p74 = scmp.eq.s32.totalorder %s15, 1
      %p75 = scmp.ne.s32.totalorder %s70, %s72
      %p76 = scmp.eq.s32.totalorder %s15, 0
      %p77 = por %p75, %p76
      %p78 = scmp.ne.s32.totalorder %s70, %s72
      %p79 = scmp.eq.s32.totalorder %s20, 1
      %p80 = por %p78, %p79
      %p81 = scmp.ne.s32.totalorder %s72, %s73
      %p82 = scmp.eq.s32.totalorder %s20, 0
      %p83 = por %p81, %p82
      %p84 = scmp.ne.s32.totalorder %s72, %s73
      %p85 = scmp.eq.s32.totalorder %s21, 1
      %p86 = por %p84, %p85
      %p88 = scmp.ne.s32.totalorder %s73, %s87
      %p89 = scmp.eq.s32.totalorder %s21, 0
      %p90 = por %p88, %p89
      %s91 = ssub.s32 %s15, %s22
      %p92 = scmp.eq.s32.totalorder %s91, 0
      %s94 = sadd.s32 %s93, 1
      %s95 = scalar_select %p92, %s93, %s94
      %p98 = pneg %p92
      %p99 = scmp.eq.s32.totalorder %s15, 1
      %p100 = por %p98, %p99
      %p101 = scmp.ne.s32.totalorder %s93, %s96
      %p102 = scmp.eq.s32.totalorder %s15, 0
      %p103 = por %p101, %p102
      %p104 = scmp.ne.s32.totalorder %s93, %s96
      %p105 = scmp.eq.s32.totalorder %s20, 1
      %p106 = por %p104, %p105
      %p107 = scmp.ne.s32.totalorder %s96, %s97
      %p108 = scmp.eq.s32.totalorder %s20, 0
      %p109 = por %p107, %p108
      %p110 = scmp.ne.s32.totalorder %s96, %s97
      %p111 = scmp.eq.s32.totalorder %s21, 1
      %p112 = por %p110, %p111
      %p114 = scmp.ne.s32.totalorder %s97, %s113
      %p115 = scmp.eq.s32.totalorder %s21, 0
      %p116 = por %p114, %p115
      %s117 = ssub.s32 %s15, %s22
      %p118 = scmp.eq.s32.totalorder %s117, 0
      %s120 = sadd.s32 %s119, 1
      %s121 = scalar_select %p118, %s119, %s120
      %p124 = pneg %p118
      %p125 = scmp.eq.s32.totalorder %s15, 1
      %p126 = por %p124, %p125
      %p127 = scmp.ne.s32.totalorder %s119, %s122
      %p128 = scmp.eq.s32.totalorder %s15, 0
      %p129 = por %p127, %p128
      %p130 = scmp.ne.s32.totalorder %s119, %s122
      %p131 = scmp.eq.s32.totalorder %s20, 1
      %p132 = por %p130, %p131
      %p133 = scmp.ne.s32.totalorder %s122, %s123
      %p134 = scmp.eq.s32.totalorder %s20, 0
      %p135 = por %p133, %p134
      %p136 = scmp.ne.s32.totalorder %s122, %s123
      %p137 = scmp.eq.s32.totalorder %s21, 1
      %p138 = por %p136, %p137
      %p140 = scmp.ne.s32.totalorder %s123, %s139
      %p141 = scmp.eq.s32.totalorder %s21, 0
      %p142 = por %p140, %p141
      %s143 = ssub.s32 %s15, %s22
      %p144 = scmp.eq.s32.totalorder %s143, 0
      %s146 = sadd.s32 %s145, 1
      %s147 = scalar_select %p144, %s145, %s146
      %p150 = pneg %p144
      %p151 = scmp.eq.s32.totalorder %s15, 1
      %p152 = por %p150, %p151
      %p153 = scmp.ne.s32.totalorder %s145, %s148
      %p154 = scmp.eq.s32.totalorder %s15, 0
      %p155 = por %p153, %p154
      %p156 = scmp.ne.s32.totalorder %s145, %s148
      %p157 = scmp.eq.s32.totalorder %s20, 1
      %p158 = por %p156, %p157
      %p159 = scmp.ne.s32.totalorder %s148, %s149
      %p160 = scmp.eq.s32.totalorder %s20, 0
      %p161 = por %p159, %p160
      %p162 = scmp.ne.s32.totalorder %s148, %s149
      %p163 = scmp.eq.s32.totalorder %s21, 1
      %p164 = por %p162, %p163
      %p166 = scmp.ne.s32.totalorder %s149, %s165
      %p167 = scmp.eq.s32.totalorder %s21, 0
      %p168 = por %p166, %p167
      %p169 = scmp.le.s32.totalorder 1, %s15
      %p170 = scmp.lt.s32.totalorder %s15, 3
      %p171 = pnand %p169, %p170
      %p172 = pneg %p171
      // Predicated region
      $region9: #{tpu_custom_call.1} parent=5 // pred_check
        _
      $region10: #{tpu_custom_call.1} parent=5 // pred_check_branch
        %174 = sbr.rel (%p171) target = $region12
      $region11: #{tpu_custom_call.1} parent=5 // pred_region
        %s175 = ssub.s32 %s15, 1
        // Predicated region
        $region13: #{tpu_custom_call.1} parent=11 // pred_check
          %p176 = pneg %p62
        $region14: #{tpu_custom_call.1} parent=11 // pred_check_branch
          %178 = sbr.rel (%p176) target = $region16
        $region15: #{tpu_custom_call.1} parent=11 // pred_region
          _
        $region16: #{tpu_custom_call.1} parent=11 // pred_fallthru
          _
        // Predicated region
        $region17: #{tpu_custom_call.1} parent=11 // pred_check
          %p179 = pneg %p83
        $region18: #{tpu_custom_call.1} parent=11 // pred_check_branch
          %181 = sbr.rel (%p179) target = $region20
        $region19: #{tpu_custom_call.1} parent=11 // pred_region
          _
        $region20: #{tpu_custom_call.1} parent=11 // pred_fallthru
          _
      $region12: #{tpu_custom_call.1} parent=5 // pred_fallthru
        _
      %p182 = scmp.lt.s32.totalorder %s15, 2
      // Predicated region
      $region21: #{tpu_custom_call.1} parent=5 // pred_check
        %p183 = pneg %p182
      $region22: #{tpu_custom_call.1} parent=5 // pred_check_branch
        %185 = sbr.rel (%p183) target = $region24
      $region23: #{tpu_custom_call.1} parent=5 // pred_region
        // Predicated region
        $region25: #{tpu_custom_call.1} parent=23 // pred_check
          %p186 = pneg %p35
        $region26: #{tpu_custom_call.1} parent=23 // pred_check_branch
          %188 = sbr.rel (%p186) target = $region28
        $region27: #{tpu_custom_call.1} parent=23 // pred_region
          %s189 = smul.u32 32, %s15
          %p190 = scmp.lt.s32.totalorder %s189, 63
          %s191 = scalar_select %p190, %s189, 63
          %s192 = smul.addr %s191, 8
          %s193 = scalar_lea.vmem %s0, %s192
          %s194 = smul.u32 32, %s15
        $region28: #{tpu_custom_call.1} parent=23 // pred_fallthru
          _
      $region24: #{tpu_custom_call.1} parent=5 // pred_fallthru
        _
      %p195 = scmp.le.s32.totalorder 1, %s15
      %p196 = scmp.lt.s32.totalorder %s15, 3
      %p197 = pnand %p195, %p196
      %p198 = pneg %p197
      // Predicated region
      $region29: #{tpu_custom_call.1} parent=5 // pred_check
        _
      $region30: #{tpu_custom_call.1} parent=5 // pred_check_branch
        %200 = sbr.rel (%p197) target = $region32
      $region31: #{tpu_custom_call.1} parent=5 // pred_region
        %s201 = ssub.s32 %s15, 1
        %s202 = smul.u32 32, %s20
        %p203 = scmp.lt.s32.totalorder %s202, 63
        %s204 = scalar_select %p203, %s202, 63
        %s205 = smul.addr %s204, 8
        %s206 = scalar_lea.vmem %s0, %s205
        %p207 = pneg %p41
        %p208 = pneg %p38
        %p209 = pneg %p62
        %p210 = pneg %p59
        %p211 = pneg %p83
        %p212 = pneg %p80
        %p213 = pneg %p109
        %p214 = pneg %p106
        %s215 = sand.u32 %s96, 1
        %s216 = scalar_lea.sflag [#allocation3], %s215
        %s217 = sand.u32 %s96, 1
        %s218 = smul.addr %s217, 128
        %s219 = scalar_lea.vmem [#allocation2], %s218
        %p220 = pneg %p135
        %p221 = pneg %p132
        %s222 = smul.u32 32, %s20
        %p223 = scmp.lt.s32.totalorder %s222, 63
        %s224 = scalar_select %p223, %s222, 63
        %s225 = smul.addr %s224, 8
        %s226 = scalar_lea.vmem %s4, %s225
        %p227 = pneg %p161
        %p228 = pneg %p158
        %s229 = smul.u32 32, %s20
        %p230 = scmp.lt.s32.totalorder %s229, 63
        %s231 = scalar_select %p230, %s229, 63
        %s232 = smul.addr %s231, 8
        %s233 = scalar_lea.vmem %s5, %s232
        %s234 = smul.u32 32, %s20
        %p235 = scmp.lt.s32.totalorder %s234, 63
        %s236 = scalar_select %p235, %s234, 63
        %s237 = smul.addr %s236, 8
        %s238 = scalar_lea.vmem %s0, %s237
        %s239 = smul.u32 32, %s20
        %s240 = smul.u32 32, %s20
        %s241 = smul.u32 32, %s20
        %p242 = scmp.lt.s32.totalorder %s241, 63
        %s243 = scalar_select %p242, %s241, 63
        %s244 = smul.addr %s243, 8
        %s245 = scalar_lea.vmem %s4, %s244
        %s246 = smul.u32 32, %s20
        %s247 = smul.u32 32, %s20
        %p248 = scmp.lt.s32.totalorder %s247, 63
        %s249 = scalar_select %p248, %s247, 63
        %s250 = smul.addr %s249, 8
        %s251 = scalar_lea.vmem %s5, %s250
        %s252 = smul.u32 32, %s20
        %v254 = vld [vmem:[%s238] sm:$0xff]
        %v255 = vld [vmem:[%s238 + $0x8] sm:$0xff]
        %v256 = vld [vmem:[%s238 + $0x10] sm:$0xff]
        %v257 = vld [vmem:[%s238 + $0x18] sm:$0xff]
        %v258 = vld [vmem:[%s238 + $0x20] sm:$0xff]
        %v259 = vld [vmem:[%s238 + $0x28] sm:$0xff]
        %v260 = vld [vmem:[%s238 + $0x30] sm:$0xff]
        %v261 = vld [vmem:[%s238 + $0x38] sm:$0xff]
        %v262 = vld [vmem:[%s238 + $0x40] sm:$0xff]
        %v263 = vld [vmem:[%s238 + $0x48] sm:$0xff]
        %v264 = vld [vmem:[%s238 + $0x50] sm:$0xff]
        %v265 = vld [vmem:[%s238 + $0x58] sm:$0xff]
        %v266 = vld [vmem:[%s238 + $0x60] sm:$0xff]
        %v267 = vld [vmem:[%s238 + $0x68] sm:$0xff]
        %v268 = vld [vmem:[%s238 + $0x70] sm:$0xff]
        %v269 = vld [vmem:[%s238 + $0x78] sm:$0xff]
        %v270 = vld [vmem:[%s238 + $0x80] sm:$0xff]
        %v271 = vld [vmem:[%s238 + $0x88] sm:$0xff]
        %v272 = vld [vmem:[%s238 + $0x90] sm:$0xff]
        %v273 = vld [vmem:[%s238 + $0x98] sm:$0xff]
        %v274 = vld [vmem:[%s238 + $0xa0] sm:$0xff]
        %v275 = vld [vmem:[%s238 + $0xa8] sm:$0xff]
        %v276 = vld [vmem:[%s238 + $0xb0] sm:$0xff]
        %v277 = vld [vmem:[%s238 + $0xb8] sm:$0xff]
        %v278 = vld [vmem:[%s238 + $0xc0] sm:$0xff]
        %v279 = vld [vmem:[%s238 + $0xc8] sm:$0xff]
        %v280 = vld [vmem:[%s238 + $0xd0] sm:$0xff]
        %v281 = vld [vmem:[%s238 + $0xd8] sm:$0xff]
        %v282 = vld [vmem:[%s238 + $0xe0] sm:$0xff]
        %v283 = vld [vmem:[%s238 + $0xe8] sm:$0xff]
        %v284 = vld [vmem:[%s238 + $0xf0] sm:$0xff]
        %v285 = vld [vmem:[%s238 + $0xf8] sm:$0xff]
        %v286 = vpack.c.bf16 %v255, %v254
        %v287 = vpack.c.bf16 %v257, %v256
        %v288 = vpack.c.bf16 %v259, %v258
        %v289 = vpack.c.bf16 %v261, %v260
        %v290 = vpack.c.bf16 %v263, %v262
        %v291 = vpack.c.bf16 %v265, %v264
        %v292 = vpack.c.bf16 %v267, %v266
        %v293 = vpack.c.bf16 %v269, %v268
        %v294 = vpack.c.bf16 %v271, %v270
        %v295 = vpack.c.bf16 %v273, %v272
        %v296 = vpack.c.bf16 %v275, %v274
        %v297 = vpack.c.bf16 %v277, %v276
        %v298 = vpack.c.bf16 %v279, %v278
        %v299 = vpack.c.bf16 %v281, %v280
        %v300 = vpack.c.bf16 %v283, %v282
        %v301 = vpack.c.bf16 %v285, %v284
        %v302 = vld [vmem:[%s1] sm:$0xff]
        %v303 = vld [vmem:[%s1 + $0x8] sm:$0xff]
        %v304 = vld [vmem:[%s1 + $0x10] sm:$0xff]
        %v305 = vld [vmem:[%s1 + $0x18] sm:$0xff]
        %v306 = vld [vmem:[%s1 + $0x20] sm:$0xff]
        %v307 = vld [vmem:[%s1 + $0x28] sm:$0xff]
        %v308 = vld [vmem:[%s1 + $0x30] sm:$0xff]
        %v309 = vld [vmem:[%s1 + $0x38] sm:$0xff]
        %v310 = vpack.c.bf16 %v303, %v302
        %v311 = vpack.c.bf16 %v305, %v304
        %v312 = vpack.c.bf16 %v307, %v306
        %v313 = vpack.c.bf16 %v309, %v308
        %vm314 = vcmask 523264
        %v316 = vsel %vm314, %v286, 0
        %v319 = vsel %vm314, %v287, 0
        %v322 = vsel %vm314, %v288, 0
        %v325 = vsel %vm314, %v289, 0
        %v328 = vsel %vm314, %v290, 0
        %v331 = vsel %vm314, %v291, 0
        %v334 = vsel %vm314, %v292, 0
        %v337 = vsel %vm314, %v293, 0
        %v340 = vsel %vm314, %v294, 0
        %v343 = vsel %vm314, %v295, 0
        %v346 = vsel %vm314, %v296, 0
        %v349 = vsel %vm314, %v297, 0
        %v352 = vsel %vm314, %v298, 0
        %v355 = vsel %vm314, %v299, 0
        %v358 = vsel %vm314, %v300, 0
        %v361 = vsel %vm314, %v301, 0
        %363 = vmatprep.subr.bf16.mxu0 0
        %364 = vmatpush1.bf16.msra.mxu0 %v310
        %365 = vmatprep.subr.bf16.mxu0 0
        %366 = vmatpush1.bf16.msra.mxu0 %v311
        %367 = vmatprep.subr.bf16.mxu0 0
        %368 = vmatpush1.bf16.msra.mxu0 %v312
        %369 = vmatprep.subr.bf16.mxu0 0
        %370 = vmatpush1.bf16.msra.mxu0 %v313
        %371 = vmatprep.subr.bf16.mxu0 0
        %372 = vmatpush1.bf16.msra.mxu0 0
        %373 = vmatprep.subr.bf16.mxu0 0
        %374 = vmatpush1.bf16.msra.mxu0 0
        %375 = vmatprep.subr.bf16.mxu0 0
        %376 = vmatpush1.bf16.msra.mxu0 0
        %377 = vmatprep.subr.bf16.mxu0 0
        %378 = vmatpush1.bf16.msra.mxu0 0
        %379 = vmatprep.subr.bf16.mxu0 0
        %380 = vmatpush1.bf16.msra.mxu0 0
        %381 = vmatprep.subr.bf16.mxu0 0
        %382 = vmatpush1.bf16.msra.mxu0 0
        %383 = vmatprep.subr.bf16.mxu0 0
        %384 = vmatpush1.bf16.msra.mxu0 0
        %385 = vmatprep.subr.bf16.mxu0 0
        %386 = vmatpush1.bf16.msra.mxu0 0
        %387 = vmatprep.subr.bf16.mxu0 0
        %388 = vmatpush1.bf16.msra.mxu0 0
        %389 = vmatprep.subr.bf16.mxu0 0
        %390 = vmatpush1.bf16.msra.mxu0 0
        %391 = vmatprep.subr.bf16.mxu0 0
        %392 = vmatpush1.bf16.msra.mxu0 0
        %393 = vmatprep.subr.bf16.mxu0 0
        %394 = vmatpush1.bf16.msra.mxu0 0
        %395 = vmatprep.mubr.bf16.mxu0 0
        %396 = vmatmul.mubr.bf16.gmra.mrb[0].mxu0 %v316
        %v397 = vpop.f32.mrb[0].mxu0
        %v398 = vadd.f32 0.0, %v397
        %v399 = vpop.f32.mrb[0].mxu0
        %v400 = vpop.f32.mrb[0].mxu0
        %v401 = vadd.f32 0.0, %v400
        %v402 = vpop.f32.mrb[0].mxu0
        %403 = vmatprep.mubr.bf16.mxu0 0
        %404 = vmatmul.mubr.bf16.gmra.mrb[0].mxu0 %v319
        %v405 = vpop.f32.mrb[0].mxu0
        %v406 = vadd.f32 0.0, %v405
        %v407 = vpop.f32.mrb[0].mxu0
        %v408 = vpop.f32.mrb[0].mxu0
        %v409 = vadd.f32 0.0, %v408
        %v410 = vpop.f32.mrb[0].mxu0
        %411 = vmatprep.mubr.bf16.mxu0 0
        %412 = vmatmul.mubr.bf16.gmra.mrb[0].mxu0 %v322
        %v413 = vpop.f32.mrb[0].mxu0
        %v414 = vadd.f32 0.0, %v413
        %v415 = vpop.f32.mrb[0].mxu0
        %v416 = vpop.f32.mrb[0].mxu0
        %v417 = vadd.f32 0.0, %v416
        %v418 = vpop.f32.mrb[0].mxu0
        %419 = vmatprep.mubr.bf16.mxu0 0
        %420 = vmatmul.mubr.bf16.gmra.mrb[0].mxu0 %v325
        %v421 = vpop.f32.mrb[0].mxu0
        %v422 = vadd.f32 0.0, %v421
        %v423 = vpop.f32.mrb[0].mxu0
        %v424 = vpop.f32.mrb[0].mxu0
        %v425 = vadd.f32 0.0, %v424
        %v426 = vpop.f32.mrb[0].mxu0
        %427 = vmatprep.mubr.bf16.mxu0 0
        %428 = vmatmul.mubr.bf16.gmra.mrb[0].mxu0 %v328
        %v429 = vpop.f32.mrb[0].mxu0
        %v430 = vadd.f32 0.0, %v429
        %v431 = vpop.f32.mrb[0].mxu0
        %v432 = vpop.f32.mrb[0].mxu0
        %v433 = vadd.f32 0.0, %v432
        %v434 = vpop.f32.mrb[0].mxu0
        %435 = vmatprep.mubr.bf16.mxu0 0
        %436 = vmatmul.mubr.bf16.gmra.mrb[0].mxu0 %v331
        %v437 = vpop.f32.mrb[0].mxu0
        %v438 = vadd.f32 0.0, %v437
        %v439 = vpop.f32.mrb[0].mxu0
        %v440 = vpop.f32.mrb[0].mxu0
        %v441 = vadd.f32 0.0, %v440
        %v442 = vpop.f32.mrb[0].mxu0
        %443 = vmatprep.mubr.bf16.mxu0 0
        %444 = vmatmul.mubr.bf16.gmra.mrb[0].mxu0 %v334
        %v445 = vpop.f32.mrb[0].mxu0
        %v446 = vadd.f32 0.0, %v445
        %v447 = vpop.f32.mrb[0].mxu0
        %v448 = vpop.f32.mrb[0].mxu0
        %v449 = vadd.f32 0.0, %v448
        %v450 = vpop.f32.mrb[0].mxu0
        %451 = vmatprep.mubr.bf16.mxu0 0
        %452 = vmatmul.mubr.bf16.gmra.mrb[0].mxu0 %v337
        %v453 = vpop.f32.mrb[0].mxu0
        %v454 = vadd.f32 0.0, %v453
        %v455 = vpop.f32.mrb[0].mxu0
        %v456 = vpop.f32.mrb[0].mxu0
        %v457 = vadd.f32 0.0, %v456
        %v458 = vpop.f32.mrb[0].mxu0
        %459 = vmatprep.mubr.bf16.mxu0 0
        %460 = vmatmul.mubr.bf16.gmra.mrb[0].mxu0 %v340
        %v461 = vpop.f32.mrb[0].mxu0
        %v462 = vadd.f32 0.0, %v461
        %v463 = vpop.f32.mrb[0].mxu0
        %v464 = vpop.f32.mrb[0].mxu0
        %v465 = vadd.f32 0.0, %v464
        %v466 = vpop.f32.mrb[0].mxu0
        %467 = vmatprep.mubr.bf16.mxu0 0
        %468 = vmatmul.mubr.bf16.gmra.mrb[0].mxu0 %v343
        %v469 = vpop.f32.mrb[0].mxu0
        %v470 = vadd.f32 0.0, %v469
        %v471 = vpop.f32.mrb[0].mxu0
        %v472 = vpop.f32.mrb[0].mxu0
        %v473 = vadd.f32 0.0, %v472
        %v474 = vpop.f32.mrb[0].mxu0
        %475 = vmatprep.mubr.bf16.mxu0 0
        %476 = vmatmul.mubr.bf16.gmra.mrb[0].mxu0 %v346
        %v477 = vpop.f32.mrb[0].mxu0
        %v478 = vadd.f32 0.0, %v477
        %v479 = vpop.f32.mrb[0].mxu0
        %v480 = vpop.f32.mrb[0].mxu0
        %v481 = vadd.f32 0.0, %v480
        %v482 = vpop.f32.mrb[0].mxu0
        %483 = vmatprep.mubr.bf16.mxu0 0
        %484 = vmatmul.mubr.bf16.gmra.mrb[0].mxu0 %v349
        %v485 = vpop.f32.mrb[0].mxu0
        %v486 = vadd.f32 0.0, %v485
        %v487 = vpop.f32.mrb[0].mxu0
        %v488 = vpop.f32.mrb[0].mxu0
        %v489 = vadd.f32 0.0, %v488
        %v490 = vpop.f32.mrb[0].mxu0
        %491 = vmatprep.mubr.bf16.mxu0 0
        %492 = vmatmul.mubr.bf16.gmra.mrb[0].mxu0 %v352
        %v493 = vpop.f32.mrb[0].mxu0
        %v494 = vadd.f32 0.0, %v493
        %v495 = vpop.f32.mrb[0].mxu0
        %v496 = vpop.f32.mrb[0].mxu0
        %v497 = vadd.f32 0.0, %v496
        %v498 = vpop.f32.mrb[0].mxu0
        %499 = vmatprep.mubr.bf16.mxu0 0
        %500 = vmatmul.mubr.bf16.gmra.mrb[0].mxu0 %v355
        %v501 = vpop.f32.mrb[0].mxu0
        %v502 = vadd.f32 0.0, %v501
        %v503 = vpop.f32.mrb[0].mxu0
        %v504 = vpop.f32.mrb[0].mxu0
        %v505 = vadd.f32 0.0, %v504
        %v506 = vpop.f32.mrb[0].mxu0
        %507 = vmatprep.mubr.bf16.mxu0 0
        %508 = vmatmul.mubr.bf16.gmra.mrb[0].mxu0 %v358
        %v509 = vpop.f32.mrb[0].mxu0
        %v510 = vadd.f32 0.0, %v509
        %v511 = vpop.f32.mrb[0].mxu0
        %v512 = vpop.f32.mrb[0].mxu0
        %v513 = vadd.f32 0.0, %v512
        %v514 = vpop.f32.mrb[0].mxu0
        %515 = vmatprep.mubr.bf16.mxu0 0
        %516 = vmatmul.mubr.bf16.gmra.mrb[0].mxu0 %v361
        %v517 = vpop.f32.mrb[0].mxu0
        %v518 = vadd.f32 0.0, %v517
        %v519 = vpop.f32.mrb[0].mxu0
        %v520 = vpop.f32.mrb[0].mxu0
        %v521 = vadd.f32 0.0, %v520
        %v522 = vpop.f32.mrb[0].mxu0
        %523 = vdwg.mxu0
        %v524 = vpack.c.bf16 %v401, %v398
        %v525 = vpack.c.bf16 %v409, %v406
        %v526 = vpack.c.bf16 %v417, %v414
        %v527 = vpack.c.bf16 %v425, %v422
        %v528 = vpack.c.bf16 %v433, %v430
        %v529 = vpack.c.bf16 %v441, %v438
        %v530 = vpack.c.bf16 %v449, %v446
        %v531 = vpack.c.bf16 %v457, %v454
        %v532 = vpack.c.bf16 %v465, %v462
        %v533 = vpack.c.bf16 %v473, %v470
        %v534 = vpack.c.bf16 %v481, %v478
        %v535 = vpack.c.bf16 %v489, %v486
        %v536 = vpack.c.bf16 %v497, %v494
        %v537 = vpack.c.bf16 %v505, %v502
        %v538 = vpack.c.bf16 %v513, %v510
        %v539 = vpack.c.bf16 %v521, %v518
        %v556 = vunpack.c.l.b16 %v524
        %v557 = vunpack.c.h.b16 %v524
        %v558 = vunpack.c.l.b16 %v525
        %v559 = vunpack.c.h.b16 %v525
        %v560 = vunpack.c.l.b16 %v526
        %v561 = vunpack.c.h.b16 %v526
        %v562 = vunpack.c.l.b16 %v527
        %v563 = vunpack.c.h.b16 %v527
        %v564 = vunpack.c.l.b16 %v528
        %v565 = vunpack.c.h.b16 %v528
        %v566 = vunpack.c.l.b16 %v529
        %v567 = vunpack.c.h.b16 %v529
        %v568 = vunpack.c.l.b16 %v530
        %v569 = vunpack.c.h.b16 %v530
        %v570 = vunpack.c.l.b16 %v531
        %v571 = vunpack.c.h.b16 %v531
        %v572 = vunpack.c.l.b16 %v532
        %v573 = vunpack.c.h.b16 %v532
        %v574 = vunpack.c.l.b16 %v533
        %v575 = vunpack.c.h.b16 %v533
        %v576 = vunpack.c.l.b16 %v534
        %v577 = vunpack.c.h.b16 %v534
        %v578 = vunpack.c.l.b16 %v535
        %v579 = vunpack.c.h.b16 %v535
        %v580 = vunpack.c.l.b16 %v536
        %v581 = vunpack.c.h.b16 %v536
        %v582 = vunpack.c.l.b16 %v537
        %v583 = vunpack.c.h.b16 %v537
        %v584 = vunpack.c.l.b16 %v538
        %v585 = vunpack.c.h.b16 %v538
        %v586 = vunpack.c.l.b16 %v539
        %v587 = vunpack.c.h.b16 %v539
        %v588 = vpack.c.b16 %v556, %v556
        %v589 = vpack.c.b16 %v557, %v557
        %v590 = vpack.c.b16 %v558, %v558
        %v591 = vpack.c.b16 %v559, %v559
        %v592 = vpack.c.b16 %v560, %v560
        %v593 = vpack.c.b16 %v561, %v561
        %v594 = vpack.c.b16 %v562, %v562
        %v595 = vpack.c.b16 %v563, %v563
        %v596 = vpack.c.b16 %v564, %v564
        %v597 = vpack.c.b16 %v565, %v565
        %v598 = vpack.c.b16 %v566, %v566
        %v599 = vpack.c.b16 %v567, %v567
        %v600 = vpack.c.b16 %v568, %v568
        %v601 = vpack.c.b16 %v569, %v569
        %v602 = vpack.c.b16 %v570, %v570
        %v603 = vpack.c.b16 %v571, %v571
        %v604 = vpack.c.b16 %v572, %v572
        %v605 = vpack.c.b16 %v573, %v573
        %v606 = vpack.c.b16 %v574, %v574
        %v607 = vpack.c.b16 %v575, %v575
        %v608 = vpack.c.b16 %v576, %v576
        %v609 = vpack.c.b16 %v577, %v577
        %v610 = vpack.c.b16 %v578, %v578
        %v611 = vpack.c.b16 %v579, %v579
        %v612 = vpack.c.b16 %v580, %v580
        %v613 = vpack.c.b16 %v581, %v581
        %v614 = vpack.c.b16 %v582, %v582
        %v615 = vpack.c.b16 %v583, %v583
        %v616 = vpack.c.b16 %v584, %v584
        %v617 = vpack.c.b16 %v585, %v585
        %v618 = vpack.c.b16 %v586, %v586
        %v619 = vpack.c.b16 %v587, %v587
        %652 = vst [vmem:[%s219] sm:$0xf] %v588
        %653 = vst [vmem:[%s219 + $0x4] sm:$0xf] %v589
        %654 = vst [vmem:[%s219 + $0x8] sm:$0xf] %v590
        %655 = vst [vmem:[%s219 + $0xc] sm:$0xf] %v591
        %656 = vst [vmem:[%s219 + $0x10] sm:$0xf] %v592
        %657 = vst [vmem:[%s219 + $0x14] sm:$0xf] %v593
        %658 = vst [vmem:[%s219 + $0x18] sm:$0xf] %v594
        %659 = vst [vmem:[%s219 + $0x1c] sm:$0xf] %v595
        %660 = vst [vmem:[%s219 + $0x20] sm:$0xf] %v596
        %661 = vst [vmem:[%s219 + $0x24] sm:$0xf] %v597
        %662 = vst [vmem:[%s219 + $0x28] sm:$0xf] %v598
        %663 = vst [vmem:[%s219 + $0x2c] sm:$0xf] %v599
        %664 = vst [vmem:[%s219 + $0x30] sm:$0xf] %v600
        %665 = vst [vmem:[%s219 + $0x34] sm:$0xf] %v601
        %666 = vst [vmem:[%s219 + $0x38] sm:$0xf] %v602
        %667 = vst [vmem:[%s219 + $0x3c] sm:$0xf] %v603
        %668 = vst [vmem:[%s219 + $0x40] sm:$0xf] %v604
        %669 = vst [vmem:[%s219 + $0x44] sm:$0xf] %v605
        %670 = vst [vmem:[%s219 + $0x48] sm:$0xf] %v606
        %671 = vst [vmem:[%s219 + $0x4c] sm:$0xf] %v607
        %672 = vst [vmem:[%s219 + $0x50] sm:$0xf] %v608
        %673 = vst [vmem:[%s219 + $0x54] sm:$0xf] %v609
        %674 = vst [vmem:[%s219 + $0x58] sm:$0xf] %v610
        %675 = vst [vmem:[%s219 + $0x5c] sm:$0xf] %v611
        %676 = vst [vmem:[%s219 + $0x60] sm:$0xf] %v612
        %677 = vst [vmem:[%s219 + $0x64] sm:$0xf] %v613
        %678 = vst [vmem:[%s219 + $0x68] sm:$0xf] %v614
        %679 = vst [vmem:[%s219 + $0x6c] sm:$0xf] %v615
        %680 = vst [vmem:[%s219 + $0x70] sm:$0xf] %v616
        %681 = vst [vmem:[%s219 + $0x74] sm:$0xf] %v617
        %682 = vst [vmem:[%s219 + $0x78] sm:$0xf] %v618
        %683 = vst [vmem:[%s219 + $0x7c] sm:$0xf] %v619
        %v684 = vld [vmem:[%s2] sm:$0xff]
        %v685 = vld [vmem:[%s2 + $0x8] sm:$0xff]
        %v686 = vld [vmem:[%s2 + $0x10] sm:$0xff]
        %v687 = vld [vmem:[%s2 + $0x18] sm:$0xff]
        %v688 = vld [vmem:[%s2 + $0x20] sm:$0xff]
        %v689 = vld [vmem:[%s2 + $0x28] sm:$0xff]
        %v690 = vld [vmem:[%s2 + $0x30] sm:$0xff]
        %v691 = vld [vmem:[%s2 + $0x38] sm:$0xff]
        %v692 = vld [vmem:[%s2 + $0x40] sm:$0xff]
        %v693 = vld [vmem:[%s2 + $0x48] sm:$0xff]
        %v694 = vld [vmem:[%s2 + $0x50] sm:$0xff]
        %v695 = vld [vmem:[%s2 + $0x58] sm:$0xff]
        %v696 = vld [vmem:[%s2 + $0x60] sm:$0xff]
        %v697 = vld [vmem:[%s2 + $0x68] sm:$0xff]
        %v698 = vld [vmem:[%s2 + $0x70] sm:$0xff]
        %v699 = vld [vmem:[%s2 + $0x78] sm:$0xff]
        %700 = vmatprep.subr.mxu0 0.0
        %701 = vmatpush1.msra.mxu0 %v684
        %702 = vmatprep.subr.mxu0 0.0
        %703 = vmatpush1.msra.mxu0 %v685
        %704 = vmatprep.subr.mxu0 0.0
        %705 = vmatpush1.msra.mxu0 %v686
        %706 = vmatprep.subr.mxu0 0.0
        %707 = vmatpush1.msra.mxu0 %v687
        %708 = vmatprep.subr.mxu0 0.0
        %709 = vmatpush1.msra.mxu0 %v688
        %710 = vmatprep.subr.mxu0 0.0
        %711 = vmatpush1.msra.mxu0 %v689
        %712 = vmatprep.subr.mxu0 0.0
        %713 = vmatpush1.msra.mxu0 %v690
        %714 = vmatprep.subr.mxu0 0.0
        %715 = vmatpush1.msra.mxu0 %v691
        %716 = vmatprep.subr.mxu0 0.0
        %717 = vmatpush1.msra.mxu0 %v692
        %718 = vmatprep.subr.mxu0 0.0
        %719 = vmatpush1.msra.mxu0 %v693
        %720 = vmatprep.subr.mxu0 0.0
        %721 = vmatpush1.msra.mxu0 %v694
        %722 = vmatprep.subr.mxu0 0.0
        %723 = vmatpush1.msra.mxu0 %v695
        %724 = vmatprep.subr.mxu0 0.0
        %725 = vmatpush1.msra.mxu0 %v696
        %726 = vmatprep.subr.mxu0 0.0
        %727 = vmatpush1.msra.mxu0 %v697
        %728 = vmatprep.subr.mxu0 0.0
        %729 = vmatpush1.msra.mxu0 %v698
        %730 = vmatprep.subr.mxu0 0.0
        %731 = vmatpush1.msra.mxu0 %v699
        %732 = vmatprep.subr.mxu0 0.0
        %733 = vmatpush1.msra.mxu0 0.0
        %734 = vmatprep.subr.mxu0 0.0
        %735 = vmatpush1.msra.mxu0 0.0
        %736 = vmatprep.subr.mxu0 0.0
        %737 = vmatpush1.msra.mxu0 0.0
        %738 = vmatprep.subr.mxu0 0.0
        %739 = vmatpush1.msra.mxu0 0.0
        %740 = vmatprep.subr.mxu0 0.0
        %741 = vmatpush1.msra.mxu0 0.0
        %742 = vmatprep.subr.mxu0 0.0
        %743 = vmatpush1.msra.mxu0 0.0
        %744 = vmatprep.subr.mxu0 0.0
        %745 = vmatpush1.msra.mxu0 0.0
        %746 = vmatprep.subr.mxu0 0.0
        %747 = vmatpush1.msra.mxu0 0.0
        %748 = vmatprep.subr.mxu0 0.0
        %749 = vmatpush1.msra.mxu0 0.0
        %750 = vmatprep.subr.mxu0 0.0
        %751 = vmatpush1.msra.mxu0 0.0
        %752 = vmatprep.subr.mxu0 0.0
        %753 = vmatpush1.msra.mxu0 0.0
        %754 = vmatprep.subr.mxu0 0.0
        %755 = vmatpush1.msra.mxu0 0.0
        %756 = vmatprep.subr.mxu0 0.0
        %757 = vmatpush1.msra.mxu0 0.0
        %758 = vmatprep.subr.mxu0 0.0
        %759 = vmatpush1.msra.mxu0 0.0
        %760 = vmatprep.subr.mxu0 0.0
        %761 = vmatpush1.msra.mxu0 0.0
        %762 = vmatprep.subr.mxu0 0.0
        %763 = vmatpush1.msra.mxu0 0.0
        %764 = vmatprep.mubr.f32.mxu0 0.0
        %765 = vmatmul.mubr.f32.gmra.mrb[0].mxu0 %v398
        %v766 = vpop.f32.mrb[0].mxu0
        %v767 = vadd.f32 0.0, %v766
        %v768 = vpop.f32.mrb[0].mxu0
        %769 = vmatprep.mubr.f32.mxu0 0.0
        %770 = vmatmul.mubr.f32.gmra.mrb[0].mxu0 %v401
        %v771 = vpop.f32.mrb[0].mxu0
        %v772 = vadd.f32 0.0, %v771
        %v773 = vpop.f32.mrb[0].mxu0
        %774 = vmatprep.mubr.f32.mxu0 0.0
        %775 = vmatmul.mubr.f32.gmra.mrb[0].mxu0 %v406
        %v776 = vpop.f32.mrb[0].mxu0
        %v777 = vadd.f32 0.0, %v776
        %v778 = vpop.f32.mrb[0].mxu0
        %779 = vmatprep.mubr.f32.mxu0 0.0
        %780 = vmatmul.mubr.f32.gmra.mrb[0].mxu0 %v409
        %v781 = vpop.f32.mrb[0].mxu0
        %v782 = vadd.f32 0.0, %v781
        %v783 = vpop.f32.mrb[0].mxu0
        %784 = vmatprep.mubr.f32.mxu0 0.0
        %785 = vmatmul.mubr.f32.gmra.mrb[0].mxu0 %v414
        %v786 = vpop.f32.mrb[0].mxu0
        %v787 = vadd.f32 0.0, %v786
        %v788 = vpop.f32.mrb[0].mxu0
        %789 = vmatprep.mubr.f32.mxu0 0.0
        %790 = vmatmul.mubr.f32.gmra.mrb[0].mxu0 %v417
        %v791 = vpop.f32.mrb[0].mxu0
        %v792 = vadd.f32 0.0, %v791
        %v793 = vpop.f32.mrb[0].mxu0
        %794 = vmatprep.mubr.f32.mxu0 0.0
        %795 = vmatmul.mubr.f32.gmra.mrb[0].mxu0 %v422
        %v796 = vpop.f32.mrb[0].mxu0
        %v797 = vadd.f32 0.0, %v796
        %v798 = vpop.f32.mrb[0].mxu0
        %799 = vmatprep.mubr.f32.mxu0 0.0
        %800 = vmatmul.mubr.f32.gmra.mrb[0].mxu0 %v425
        %v801 = vpop.f32.mrb[0].mxu0
        %v802 = vadd.f32 0.0, %v801
        %v803 = vpop.f32.mrb[0].mxu0
        %804 = vmatprep.mubr.f32.mxu0 0.0
        %805 = vmatmul.mubr.f32.gmra.mrb[0].mxu0 %v430
        %v806 = vpop.f32.mrb[0].mxu0
        %v807 = vadd.f32 0.0, %v806
        %v808 = vpop.f32.mrb[0].mxu0
        %809 = vmatprep.mubr.f32.mxu0 0.0
        %810 = vmatmul.mubr.f32.gmra.mrb[0].mxu0 %v433
        %v811 = vpop.f32.mrb[0].mxu0
        %v812 = vadd.f32 0.0, %v811
        %v813 = vpop.f32.mrb[0].mxu0
        %814 = vmatprep.mubr.f32.mxu0 0.0
        %815 = vmatmul.mubr.f32.gmra.mrb[0].mxu0 %v438
        %v816 = vpop.f32.mrb[0].mxu0
        %v817 = vadd.f32 0.0, %v816
        %v818 = vpop.f32.mrb[0].mxu0
        %819 = vmatprep.mubr.f32.mxu0 0.0
        %820 = vmatmul.mubr.f32.gmra.mrb[0].mxu0 %v441
        %v821 = vpop.f32.mrb[0].mxu0
        %v822 = vadd.f32 0.0, %v821
        %v823 = vpop.f32.mrb[0].mxu0
        %824 = vmatprep.mubr.f32.mxu0 0.0
        %825 = vmatmul.mubr.f32.gmra.mrb[0].mxu0 %v446
        %v826 = vpop.f32.mrb[0].mxu0
        %v827 = vadd.f32 0.0, %v826
        %v828 = vpop.f32.mrb[0].mxu0
        %829 = vmatprep.mubr.f32.mxu0 0.0
        %830 = vmatmul.mubr.f32.gmra.mrb[0].mxu0 %v449
        %v831 = vpop.f32.mrb[0].mxu0
        %v832 = vadd.f32 0.0, %v831
        %v833 = vpop.f32.mrb[0].mxu0
        %834 = vmatprep.mubr.f32.mxu0 0.0
        %835 = vmatmul.mubr.f32.gmra.mrb[0].mxu0 %v454
        %v836 = vpop.f32.mrb[0].mxu0
        %v837 = vadd.f32 0.0, %v836
        %v838 = vpop.f32.mrb[0].mxu0
        %839 = vmatprep.mubr.f32.mxu0 0.0
        %840 = vmatmul.mubr.f32.gmra.mrb[0].mxu0 %v457
        %v841 = vpop.f32.mrb[0].mxu0
        %v842 = vadd.f32 0.0, %v841
        %v843 = vpop.f32.mrb[0].mxu0
        %844 = vmatprep.mubr.f32.mxu0 0.0
        %845 = vmatmul.mubr.f32.gmra.mrb[0].mxu0 %v462
        %v846 = vpop.f32.mrb[0].mxu0
        %v847 = vadd.f32 0.0, %v846
        %v848 = vpop.f32.mrb[0].mxu0
        %849 = vmatprep.mubr.f32.mxu0 0.0
        %850 = vmatmul.mubr.f32.gmra.mrb[0].mxu0 %v465
        %v851 = vpop.f32.mrb[0].mxu0
        %v852 = vadd.f32 0.0, %v851
        %v853 = vpop.f32.mrb[0].mxu0
        %854 = vmatprep.mubr.f32.mxu0 0.0
        %855 = vmatmul.mubr.f32.gmra.mrb[0].mxu0 %v470
        %v856 = vpop.f32.mrb[0].mxu0
        %v857 = vadd.f32 0.0, %v856
        %v858 = vpop.f32.mrb[0].mxu0
        %859 = vmatprep.mubr.f32.mxu0 0.0
        %860 = vmatmul.mubr.f32.gmra.mrb[0].mxu0 %v473
        %v861 = vpop.f32.mrb[0].mxu0
        %v862 = vadd.f32 0.0, %v861
        %v863 = vpop.f32.mrb[0].mxu0
        %864 = vmatprep.mubr.f32.mxu0 0.0
        %865 = vmatmul.mubr.f32.gmra.mrb[0].mxu0 %v478
        %v866 = vpop.f32.mrb[0].mxu0
        %v867 = vadd.f32 0.0, %v866
        %v868 = vpop.f32.mrb[0].mxu0
        %869 = vmatprep.mubr.f32.mxu0 0.0
        %870 = vmatmul.mubr.f32.gmra.mrb[0].mxu0 %v481
        %v871 = vpop.f32.mrb[0].mxu0
        %v872 = vadd.f32 0.0, %v871
        %v873 = vpop.f32.mrb[0].mxu0
        %874 = vmatprep.mubr.f32.mxu0 0.0
        %875 = vmatmul.mubr.f32.gmra.mrb[0].mxu0 %v486
        %v876 = vpop.f32.mrb[0].mxu0
        %v877 = vadd.f32 0.0, %v876
        %v878 = vpop.f32.mrb[0].mxu0
        %879 = vmatprep.mubr.f32.mxu0 0.0
        %880 = vmatmul.mubr.f32.gmra.mrb[0].mxu0 %v489
        %v881 = vpop.f32.mrb[0].mxu0
        %v882 = vadd.f32 0.0, %v881
        %v883 = vpop.f32.mrb[0].mxu0
        %884 = vmatprep.mubr.f32.mxu0 0.0
        %885 = vmatmul.mubr.f32.gmra.mrb[0].mxu0 %v494
        %v886 = vpop.f32.mrb[0].mxu0
        %v887 = vadd.f32 0.0, %v886
        %v888 = vpop.f32.mrb[0].mxu0
        %889 = vmatprep.mubr.f32.mxu0 0.0
        %890 = vmatmul.mubr.f32.gmra.mrb[0].mxu0 %v497
        %v891 = vpop.f32.mrb[0].mxu0
        %v892 = vadd.f32 0.0, %v891
        %v893 = vpop.f32.mrb[0].mxu0
        %894 = vmatprep.mubr.f32.mxu0 0.0
        %895 = vmatmul.mubr.f32.gmra.mrb[0].mxu0 %v502
        %v896 = vpop.f32.mrb[0].mxu0
        %v897 = vadd.f32 0.0, %v896
        %v898 = vpop.f32.mrb[0].mxu0
        %899 = vmatprep.mubr.f32.mxu0 0.0
        %900 = vmatmul.mubr.f32.gmra.mrb[0].mxu0 %v505
        %v901 = vpop.f32.mrb[0].mxu0
        %v902 = vadd.f32 0.0, %v901
        %v903 = vpop.f32.mrb[0].mxu0
        %904 = vmatprep.mubr.f32.mxu0 0.0
        %905 = vmatmul.mubr.f32.gmra.mrb[0].mxu0 %v510
        %v906 = vpop.f32.mrb[0].mxu0
        %v907 = vadd.f32 0.0, %v906
        %v908 = vpop.f32.mrb[0].mxu0
        %909 = vmatprep.mubr.f32.mxu0 0.0
        %910 = vmatmul.mubr.f32.gmra.mrb[0].mxu0 %v513
        %v911 = vpop.f32.mrb[0].mxu0
        %v912 = vadd.f32 0.0, %v911
        %v913 = vpop.f32.mrb[0].mxu0
        %914 = vmatprep.mubr.f32.mxu0 0.0
        %915 = vmatmul.mubr.f32.gmra.mrb[0].mxu0 %v518
        %v916 = vpop.f32.mrb[0].mxu0
        %v917 = vadd.f32 0.0, %v916
        %v918 = vpop.f32.mrb[0].mxu0
        %919 = vmatprep.mubr.f32.mxu0 0.0
        %920 = vmatmul.mubr.f32.gmra.mrb[0].mxu0 %v521
        %v921 = vpop.f32.mrb[0].mxu0
        %v922 = vadd.f32 0.0, %v921
        %v923 = vpop.f32.mrb[0].mxu0
        %924 = vdwg.mxu0
        %vm925 = vcmask 31744
        %926 = vst.msk [vmem:[%s245] sm:$0xff] %vm925, %v767
        %927 = vst.msk [vmem:[%s245 + $0x8] sm:$0xff] %vm925, %v772
        %928 = vst.msk [vmem:[%s245 + $0x10] sm:$0xff] %vm925, %v777
        %929 = vst.msk [vmem:[%s245 + $0x18] sm:$0xff] %vm925, %v782
        %930 = vst.msk [vmem:[%s245 + $0x20] sm:$0xff] %vm925, %v787
        %931 = vst.msk [vmem:[%s245 + $0x28] sm:$0xff] %vm925, %v792
        %932 = vst.msk [vmem:[%s245 + $0x30] sm:$0xff] %vm925, %v797
        %933 = vst.msk [vmem:[%s245 + $0x38] sm:$0xff] %vm925, %v802
        %934 = vst.msk [vmem:[%s245 + $0x40] sm:$0xff] %vm925, %v807
        %935 = vst.msk [vmem:[%s245 + $0x48] sm:$0xff] %vm925, %v812
        %936 = vst.msk [vmem:[%s245 + $0x50] sm:$0xff] %vm925, %v817
        %937 = vst.msk [vmem:[%s245 + $0x58] sm:$0xff] %vm925, %v822
        %938 = vst.msk [vmem:[%s245 + $0x60] sm:$0xff] %vm925, %v827
        %939 = vst.msk [vmem:[%s245 + $0x68] sm:$0xff] %vm925, %v832
        %940 = vst.msk [vmem:[%s245 + $0x70] sm:$0xff] %vm925, %v837
        %941 = vst.msk [vmem:[%s245 + $0x78] sm:$0xff] %vm925, %v842
        %942 = vst.msk [vmem:[%s245 + $0x80] sm:$0xff] %vm925, %v847
        %943 = vst.msk [vmem:[%s245 + $0x88] sm:$0xff] %vm925, %v852
        %944 = vst.msk [vmem:[%s245 + $0x90] sm:$0xff] %vm925, %v857
        %945 = vst.msk [vmem:[%s245 + $0x98] sm:$0xff] %vm925, %v862
        %946 = vst.msk [vmem:[%s245 + $0xa0] sm:$0xff] %vm925, %v867
        %947 = vst.msk [vmem:[%s245 + $0xa8] sm:$0xff] %vm925, %v872
        %948 = vst.msk [vmem:[%s245 + $0xb0] sm:$0xff] %vm925, %v877
        %949 = vst.msk [vmem:[%s245 + $0xb8] sm:$0xff] %vm925, %v882
        %950 = vst.msk [vmem:[%s245 + $0xc0] sm:$0xff] %vm925, %v887
        %951 = vst.msk [vmem:[%s245 + $0xc8] sm:$0xff] %vm925, %v892
        %952 = vst.msk [vmem:[%s245 + $0xd0] sm:$0xff] %vm925, %v897
        %953 = vst.msk [vmem:[%s245 + $0xd8] sm:$0xff] %vm925, %v902
        %954 = vst.msk [vmem:[%s245 + $0xe0] sm:$0xff] %vm925, %v907
        %955 = vst.msk [vmem:[%s245 + $0xe8] sm:$0xff] %vm925, %v912
        %956 = vst.msk [vmem:[%s245 + $0xf0] sm:$0xff] %vm925, %v917
        %957 = vst.msk [vmem:[%s245 + $0xf8] sm:$0xff] %vm925, %v922
        %990 = vrot.lane.b32.xlu0 %v767, 124
        %v991 = vpop.permute.xlu0 %990
        %992 = vrot.lane.b32.xlu0 %v772, 124
        %v993 = vpop.permute.xlu0 %992
        %994 = vrot.lane.b32.xlu0 %v777, 124
        %v995 = vpop.permute.xlu0 %994
        %996 = vrot.lane.b32.xlu0 %v782, 124
        %v997 = vpop.permute.xlu0 %996
        %998 = vrot.lane.b32.xlu0 %v787, 124
        %v999 = vpop.permute.xlu0 %998
        %1000 = vrot.lane.b32.xlu0 %v792, 124
        %v1001 = vpop.permute.xlu0 %1000
        %1002 = vrot.lane.b32.xlu0 %v797, 124
        %v1003 = vpop.permute.xlu0 %1002
        %1004 = vrot.lane.b32.xlu0 %v802, 124
        %v1005 = vpop.permute.xlu0 %1004
        %1006 = vrot.lane.b32.xlu0 %v807, 124
        %v1007 = vpop.permute.xlu0 %1006
        %1008 = vrot.lane.b32.xlu0 %v812, 124
        %v1009 = vpop.permute.xlu0 %1008
        %1010 = vrot.lane.b32.xlu0 %v817, 124
        %v1011 = vpop.permute.xlu0 %1010
        %1012 = vrot.lane.b32.xlu0 %v822, 124
        %v1013 = vpop.permute.xlu0 %1012
        %1014 = vrot.lane.b32.xlu0 %v827, 124
        %v1015 = vpop.permute.xlu0 %1014
        %1016 = vrot.lane.b32.xlu0 %v832, 124
        %v1017 = vpop.permute.xlu0 %1016
        %1018 = vrot.lane.b32.xlu0 %v837, 124
        %v1019 = vpop.permute.xlu0 %1018
        %1020 = vrot.lane.b32.xlu0 %v842, 124
        %v1021 = vpop.permute.xlu0 %1020
        %1022 = vrot.lane.b32.xlu0 %v847, 124
        %v1023 = vpop.permute.xlu0 %1022
        %1024 = vrot.lane.b32.xlu0 %v852, 124
        %v1025 = vpop.permute.xlu0 %1024
        %1026 = vrot.lane.b32.xlu0 %v857, 124
        %v1027 = vpop.permute.xlu0 %1026
        %1028 = vrot.lane.b32.xlu0 %v862, 124
        %v1029 = vpop.permute.xlu0 %1028
        %1030 = vrot.lane.b32.xlu0 %v867, 124
        %v1031 = vpop.permute.xlu0 %1030
        %1032 = vrot.lane.b32.xlu0 %v872, 124
        %v1033 = vpop.permute.xlu0 %1032
        %1034 = vrot.lane.b32.xlu0 %v877, 124
        %v1035 = vpop.permute.xlu0 %1034
        %1036 = vrot.lane.b32.xlu0 %v882, 124
        %v1037 = vpop.permute.xlu0 %1036
        %1038 = vrot.lane.b32.xlu0 %v887, 124
        %v1039 = vpop.permute.xlu0 %1038
        %1040 = vrot.lane.b32.xlu0 %v892, 124
        %v1041 = vpop.permute.xlu0 %1040
        %1042 = vrot.lane.b32.xlu0 %v897, 124
        %v1043 = vpop.permute.xlu0 %1042
        %1044 = vrot.lane.b32.xlu0 %v902, 124
        %v1045 = vpop.permute.xlu0 %1044
        %1046 = vrot.lane.b32.xlu0 %v907, 124
        %v1047 = vpop.permute.xlu0 %1046
        %1048 = vrot.lane.b32.xlu0 %v912, 124
        %v1049 = vpop.permute.xlu0 %1048
        %1050 = vrot.lane.b32.xlu0 %v917, 124
        %v1051 = vpop.permute.xlu0 %1050
        %1052 = vrot.lane.b32.xlu0 %v922, 124
        %v1053 = vpop.permute.xlu0 %1052
        %1086 = vst.msk [vmem:[%s251] sm:$0xff] %vm925, %v991
        %1087 = vst.msk [vmem:[%s251 + $0x8] sm:$0xff] %vm925, %v993
        %1088 = vst.msk [vmem:[%s251 + $0x10] sm:$0xff] %vm925, %v995
        %1089 = vst.msk [vmem:[%s251 + $0x18] sm:$0xff] %vm925, %v997
        %1090 = vst.msk [vmem:[%s251 + $0x20] sm:$0xff] %vm925, %v999
        %1091 = vst.msk [vmem:[%s251 + $0x28] sm:$0xff] %vm925, %v1001
        %1092 = vst.msk [vmem:[%s251 + $0x30] sm:$0xff] %vm925, %v1003
        %1093 = vst.msk [vmem:[%s251 + $0x38] sm:$0xff] %vm925, %v1005
        %1094 = vst.msk [vmem:[%s251 + $0x40] sm:$0xff] %vm925, %v1007
        %1095 = vst.msk [vmem:[%s251 + $0x48] sm:$0xff] %vm925, %v1009
        %1096 = vst.msk [vmem:[%s251 + $0x50] sm:$0xff] %vm925, %v1011
        %1097 = vst.msk [vmem:[%s251 + $0x58] sm:$0xff] %vm925, %v1013
        %1098 = vst.msk [vmem:[%s251 + $0x60] sm:$0xff] %vm925, %v1015
        %1099 = vst.msk [vmem:[%s251 + $0x68] sm:$0xff] %vm925, %v1017
        %1100 = vst.msk [vmem:[%s251 + $0x70] sm:$0xff] %vm925, %v1019
        %1101 = vst.msk [vmem:[%s251 + $0x78] sm:$0xff] %vm925, %v1021
        %1102 = vst.msk [vmem:[%s251 + $0x80] sm:$0xff] %vm925, %v1023
        %1103 = vst.msk [vmem:[%s251 + $0x88] sm:$0xff] %vm925, %v1025
        %1104 = vst.msk [vmem:[%s251 + $0x90] sm:$0xff] %vm925, %v1027
        %1105 = vst.msk [vmem:[%s251 + $0x98] sm:$0xff] %vm925, %v1029
        %1106 = vst.msk [vmem:[%s251 + $0xa0] sm:$0xff] %vm925, %v1031
        %1107 = vst.msk [vmem:[%s251 + $0xa8] sm:$0xff] %vm925, %v1033
        %1108 = vst.msk [vmem:[%s251 + $0xb0] sm:$0xff] %vm925, %v1035
        %1109 = vst.msk [vmem:[%s251 + $0xb8] sm:$0xff] %vm925, %v1037
        %1110 = vst.msk [vmem:[%s251 + $0xc0] sm:$0xff] %vm925, %v1039
        %1111 = vst.msk [vmem:[%s251 + $0xc8] sm:$0xff] %vm925, %v1041
        %1112 = vst.msk [vmem:[%s251 + $0xd0] sm:$0xff] %vm925, %v1043
        %1113 = vst.msk [vmem:[%s251 + $0xd8] sm:$0xff] %vm925, %v1045
        %1114 = vst.msk [vmem:[%s251 + $0xe0] sm:$0xff] %vm925, %v1047
        %1115 = vst.msk [vmem:[%s251 + $0xe8] sm:$0xff] %vm925, %v1049
        %1116 = vst.msk [vmem:[%s251 + $0xf0] sm:$0xff] %vm925, %v1051
        %1117 = vst.msk [vmem:[%s251 + $0xf8] sm:$0xff] %vm925, %v1053
        %s1118 = sand.u32 %s96, 1
        %s1119 = scalar_lea.sflag [#allocation3], %s1118
        %s1120 = sand.u32 %s96, 1
        %s1121 = smul.addr %s1120, 128
        %s1122 = scalar_lea.vmem [#allocation2], %s1121
        %s1123 = smul.u32 32, %s20
        %p1124 = scmp.lt.s32.totalorder %s1123, 63
        %s1125 = scalar_select %p1124, %s1123, 63
        %s1126 = smul.addr %s1125, 8
        %s1127 = scalar_lea.vmem %s4, %s1126
        %s1128 = smul.u32 32, %s20
        %p1129 = scmp.lt.s32.totalorder %s1128, 63
        %s1130 = scalar_select %p1129, %s1128, 63
        %s1131 = smul.addr %s1130, 8
        %s1132 = scalar_lea.vmem %s5, %s1131
        // Predicated region
        $region33: #{tpu_custom_call.1} parent=31 // pred_check
          %p1133 = pneg %p106
        $region34: #{tpu_custom_call.1} parent=31 // pred_check_branch
          %1135 = sbr.rel (%p1133) target = $region36
        $region35: #{tpu_custom_call.1} parent=31 // pred_region
          %s1136 = smul.u32 32, %s20
          %s1138 = ssub.s32 2048, 2048
          %1139 = vsyncadd %s1119, %s1138
          %s1140 = smul.addr %s1136, 64
          %s1141 = scalar_lea.hbm %s3, %s1140
          %s1142 = sshll.u32 %s1122, 4
          %s1143 = int_to_ptr.vmem [resolvable:$true] %s1142
          %1148 = dma.vmem_to_hbm [thread:$0]  %s1143, 2048, %s1141, %s1119, 64, 64, 4
        $region36: #{tpu_custom_call.1} parent=31 // pred_fallthru
          _
        // Predicated region
        $region37: #{tpu_custom_call.1} parent=31 // pred_check
          %p1149 = pneg %p132
        $region38: #{tpu_custom_call.1} parent=31 // pred_check_branch
          %1151 = sbr.rel (%p1149) target = $region40
        $region39: #{tpu_custom_call.1} parent=31 // pred_region
          %s1152 = smul.u32 32, %s20
        $region40: #{tpu_custom_call.1} parent=31 // pred_fallthru
          _
        // Predicated region
        $region41: #{tpu_custom_call.1} parent=31 // pred_check
          %p1153 = pneg %p158
        $region42: #{tpu_custom_call.1} parent=31 // pred_check_branch
          %1155 = sbr.rel (%p1153) target = $region44
        $region43: #{tpu_custom_call.1} parent=31 // pred_region
          %s1156 = smul.u32 32, %s20
        $region44: #{tpu_custom_call.1} parent=31 // pred_fallthru
          _
      $region32: #{tpu_custom_call.1} parent=5 // pred_fallthru
        _
      %p1157 = scmp.le.s32.totalorder 2, %s15
      // Predicated region
      $region45: #{tpu_custom_call.1} parent=5 // pred_check
        %p1158 = pneg %p1157
      $region46: #{tpu_custom_call.1} parent=5 // pred_check_branch
        %1160 = sbr.rel (%p1158) target = $region48
      $region47: #{tpu_custom_call.1} parent=5 // pred_region
        %s1161 = ssub.s32 %s15, 2
        // Predicated region
        $region49: #{tpu_custom_call.1} parent=47 // pred_check
          %p1162 = pneg %p112
        $region50: #{tpu_custom_call.1} parent=47 // pred_check_branch
          %1164 = sbr.rel (%p1162) target = $region52
        $region51: #{tpu_custom_call.1} parent=47 // pred_region
          %s1165 = sand.u32 %s97, 1
          %s1166 = scalar_lea.sflag [#allocation3], %s1165
          %s1167 = sand.u32 %s97, 1
          %s1168 = smul.addr %s1167, 128
          %s1169 = scalar_lea.vmem [#allocation2], %s1168
          %1170 = dma.done %s1166, 2048
        $region52: #{tpu_custom_call.1} parent=47 // pred_fallthru
          _
        // Predicated region
        $region53: #{tpu_custom_call.1} parent=47 // pred_check
          %p1171 = pneg %p138
        $region54: #{tpu_custom_call.1} parent=47 // pred_check_branch
          %1173 = sbr.rel (%p1171) target = $region56
        $region55: #{tpu_custom_call.1} parent=47 // pred_region
          %s1174 = smul.u32 32, %s21
          %p1175 = scmp.lt.s32.totalorder %s1174, 63
          %s1176 = scalar_select %p1175, %s1174, 63
          %s1177 = smul.addr %s1176, 8
          %s1178 = scalar_lea.vmem %s4, %s1177
        $region56: #{tpu_custom_call.1} parent=47 // pred_fallthru
          _
        // Predicated region
        $region57: #{tpu_custom_call.1} parent=47 // pred_check
          %p1179 = pneg %p164
        $region58: #{tpu_custom_call.1} parent=47 // pred_check_branch
          %1181 = sbr.rel (%p1179) target = $region60
        $region59: #{tpu_custom_call.1} parent=47 // pred_region
          %s1182 = smul.u32 32, %s21
          %p1183 = scmp.lt.s32.totalorder %s1182, 63
          %s1184 = scalar_select %p1183, %s1182, 63
          %s1185 = smul.addr %s1184, 8
          %s1186 = scalar_lea.vmem %s5, %s1185
        $region60: #{tpu_custom_call.1} parent=47 // pred_fallthru
          _
      $region48: #{tpu_custom_call.1} parent=5 // pred_fallthru
        _
    $region6: #{tpu_custom_call.1} parent=1 // loop_footer
      %s19 = sadd.s32 1, %s15
    $region7: #{tpu_custom_call.1} parent=1 // loop_footer_branch
      %14 = sbr.rel target = $region3
    $region8: #{tpu_custom_call.1} parent=1 // loop_exit
      _
    %1187 = vsyncpa [#allocation3], 1
    %s1188 = scalar_lea.sflag [#allocation3], 1
    %1189 = vsyncpa %s1188, 1

</llo_original>
